<compile_context>
chip_gen: v5e
topology: v5e:2x2
jax: 0.10.0
libtpu: 0.0.40
codegen_flags: <defaults>
</compile_context>

<pallas_src>
import functools

import jax
import jax.numpy as jnp
from jax.experimental import pallas as pl
from jax.experimental.pallas import tpu as pltpu


# Static, 128-aligned lane offsets for the packed bias vector.
_B1_OFF, _B2_OFF, _B3_OFF, _B4_OFF = 0, 128, 256, 384
_PACKED_BIAS_LANES = 512  # supports output_dim <= 128


def ge_mlp_kernel(x_ref, w1_ref, w2_ref, w3_ref, w4_ref, b_ref, o_ref, *, out_dim):
    # Packed biases: static, lane-aligned slices of one small f32 vector.
    b1 = b_ref[:, _B1_OFF:_B1_OFF + 128]
    b2 = b_ref[:, _B2_OFF:_B2_OFF + 128]
    b3 = b_ref[:, _B3_OFF:_B3_OFF + 64]
    b4 = b_ref[:, _B4_OFF:_B4_OFF + out_dim]

    # x arrives as f32 straight from HBM; cast to bf16 just before the MXU.
    z = jnp.dot(x_ref[...].astype(jnp.bfloat16), w1_ref[...],
                preferred_element_type=jnp.float32)
    z = jnp.maximum(z + b1, 0.0)

    z = jnp.dot(z.astype(jnp.bfloat16), w2_ref[...],
                preferred_element_type=jnp.float32)
    z = jnp.maximum(z + b2, 0.0)

    z = jnp.dot(z.astype(jnp.bfloat16), w3_ref[...],
                preferred_element_type=jnp.float32)
    z = jnp.maximum(z + b3, 0.0)

    z = jnp.dot(z.astype(jnp.bfloat16), w4_ref[...],
                preferred_element_type=jnp.float32)
    o_ref[...] = (z + b4).astype(o_ref.dtype)


def _round_up(x, m):
    return (x + m - 1) // m * m


def _pick_tile_b(B):
    # Small batches: one tile covering the whole batch (block == full dim, so
    # no sublane-divisibility requirement).  Larger batches: MXU-aligned tile
    # (multiple of 256, hence of 8), >=2 grid steps for v7x megacore, capped
    # at 2048 to stay inside v5e's 16 MiB scoped-VMEM default.
    if B <= 256:
        return B
    return min(2048, _round_up(pl.cdiv(B, 2), 256))


def ge_model_forward(x, kparams, *, tile_b=None):
    """GEModel forward. x: (B, input_dim) f32 -> logits (B, output_dim) f32.

    kparams: output of prepare_params() (bf16 transposed weights + packed bias).
    """
    B, in_dim = x.shape
    w1b, w2b, w3b, w4b = kparams["w1"], kparams["w2"], kparams["w3"], kparams["w4"]
    bias = kparams["bias"]  # (1, 512) f32, packed b1..b4
    out_dim = kparams["out_dim"]
    assert out_dim <= 128, "packed-bias layout assumes output_dim <= 128"

    if tile_b is None:
        tile_b = _pick_tile_b(B)
    assert tile_b == B or tile_b % 8 == 0, "tile_b must be a multiple of 8 (or == B)"

    grid = (pl.cdiv(B, tile_b),)

    flops = 2 * B * (in_dim * 128 + 128 * 128 + 128 * 64 + 64 * out_dim)
    bytes_accessed = (
        int(x.size) * 4
        + sum(int(w.size) * 2 for w in (w1b, w2b, w3b, w4b))
        + int(bias.size) * 4
        + B * out_dim * 4)

    full = lambda shape: pl.BlockSpec(shape, lambda i: (0, 0))

    kernel = functools.partial(ge_mlp_kernel, out_dim=out_dim)

    return pl.pallas_call(
        kernel,
        out_shape=jax.ShapeDtypeStruct((B, out_dim), jnp.float32),
        grid_spec=pltpu.PrefetchScalarGridSpec(
            num_scalar_prefetch=0,
            grid=grid,
            in_specs=[
                pl.BlockSpec((tile_b, in_dim), lambda i: (i, 0)),
                full(w1b.shape), full(w2b.shape),
                full(w3b.shape), full(w4b.shape),
                full(bias.shape),
            ],
            out_specs=pl.BlockSpec((tile_b, out_dim), lambda i: (i, 0)),
        ),
        compiler_params=pltpu.CompilerParams(
            dimension_semantics=("parallel",)),
        cost_estimate=pl.CostEstimate(
            flops=flops, transcendentals=0, bytes_accessed=bytes_accessed),
    )(x, w1b, w2b, w3b, w4b, bias)


def init_params(key, input_dim, output_dim):
    """Deterministic init mimicking nn.Linear; weights stored transposed (in, out),
    all f32 (PyTorch semantics)."""
    dims = [(input_dim, 128), (128, 128), (128, 64), (64, output_dim)]
    params = {}
    for idx, (fan_in, fan_out) in enumerate(dims, start=1):
        key, kw, kb = jax.random.split(key, 3)
        bound = 1.0 / jnp.sqrt(fan_in)
        # PyTorch Linear weight is (out, in); we store its transpose (in, out).
        w = jax.random.uniform(kw, (fan_in, fan_out), jnp.float32, -bound, bound)
        b = jax.random.uniform(kb, (1, fan_out), jnp.float32, -bound, bound)
        params[f"w{idx}"] = w
        params[f"b{idx}"] = b
    return params


def prepare_params(params):
    """One-time, kernel-ready prep: bf16 weight copies (MXU-native feed) and a
    single packed, lane-aligned f32 bias vector."""
    out_dim = params["w4"].shape[1]
    bias = jnp.zeros((1, _PACKED_BIAS_LANES), jnp.float32)
    for b, off in ((params["b1"], _B1_OFF), (params["b2"], _B2_OFF),
                   (params["b3"], _B3_OFF), (params["b4"], _B4_OFF)):
        bias = bias.at[:, off:off + b.shape[1]].set(b)
    return {
        "w1": params["w1"].astype(jnp.bfloat16),
        "w2": params["w2"].astype(jnp.bfloat16),
        "w3": params["w3"].astype(jnp.bfloat16),
        "w4": params["w4"].astype(jnp.bfloat16),
        "bias": bias,
        "out_dim": out_dim,
    }


def _ref_bf16(x, p):
    # Same bf16 matmul inputs / f32 accumulation as the kernel.
    bf = lambda a: a.astype(jnp.bfloat16)
    z = jnp.dot(bf(x), bf(p["w1"]), preferred_element_type=jnp.float32)
    z = jnp.maximum(z + p["b1"], 0.0)
    z = jnp.dot(bf(z), bf(p["w2"]), preferred_element_type=jnp.float32)
    z = jnp.maximum(z + p["b2"], 0.0)
    z = jnp.dot(bf(z), bf(p["w3"]), preferred_element_type=jnp.float32)
    z = jnp.maximum(z + p["b3"], 0.0)
    z = jnp.dot(bf(z), bf(p["w4"]), preferred_element_type=jnp.float32)
    return z + p["b4"]


def _ref_f32(x, p):
    # Original PyTorch (all-f32) semantics for the loose-tolerance check.
    z = jnp.maximum(x @ p["w1"] + p["b1"], 0.0)
    z = jnp.maximum(z @ p["w2"] + p["b2"], 0.0)
    z = jnp.maximum(z @ p["w3"] + p["b3"], 0.0)
    return z @ p["w4"] + p["b4"]


if __name__ == "__main__":
    key = jax.random.PRNGKey(0)
    B, input_dim, output_dim = 8, 32, 16
    key, kx, kx2 = jax.random.split(key, 3)
    x = jax.random.normal(kx, (B, input_dim), jnp.float32)
    params = init_params(key, input_dim, output_dim)
    kparams = prepare_params(params)

    # Small batch: single-tile grid.
    logits = ge_model_forward(x, kparams)
    jax.block_until_ready(logits)
    assert logits.shape == (B, output_dim)
    assert jnp.allclose(logits, _ref_bf16(x, params), atol=1e-3, rtol=1e-3)
    assert jnp.allclose(logits, _ref_f32(x, params), atol=5e-2, rtol=5e-2)

    # Ragged multi-step batch: exercises the pl.cdiv edge-block path
    # (grid of 2, last block partial) on the same kernel.
    B2 = 300
    x2 = jax.random.normal(kx2, (B2, input_dim), jnp.float32)
    logits2 = ge_model_forward(x2, kparams)
    jax.block_until_ready(logits2)
    assert logits2.shape == (B2, output_dim)
    assert jnp.allclose(logits2, _ref_bf16(x2, params), atol=1e-3, rtol=1e-3)
    assert jnp.allclose(logits2, _ref_f32(x2, params), atol=5e-2, rtol=5e-2)

    print("KERNEL_OK")
</pallas_src>

<mosaic_0001>
module attributes {stable_mosaic.version = 11 : i64} {
  func.func @ge_mlp_kernel(%arg0: i32, %arg1: memref<8x32xf32, #tpu.memory_space<vmem>>, %arg2: memref<32x128xbf16, #tpu.memory_space<vmem>>, %arg3: memref<128x128xbf16, #tpu.memory_space<vmem>>, %arg4: memref<128x64xbf16, #tpu.memory_space<vmem>>, %arg5: memref<64x16xbf16, #tpu.memory_space<vmem>>, %arg6: memref<1x512xf32, #tpu.memory_space<vmem>>, %arg7: memref<8x16xf32, #tpu.memory_space<vmem>>) attributes {dimension_semantics = [#tpu.dimension_semantics<parallel>], iteration_bounds = array<i64: 1>, scalar_prefetch = 0 : i64, scratch_operands = 0 : i64, tpu.core_type = #tpu.core_type<tc>, window_params = [{transform_indices = @transform_0, window_bounds = array<i64: 8, 32>}, {pipeline_mode = #tpu.pipeline_mode<synchronous>, transform_indices = @transform_1, window_bounds = array<i64: 32, 128>}, {pipeline_mode = #tpu.pipeline_mode<synchronous>, transform_indices = @transform_2, window_bounds = array<i64: 128, 128>}, {pipeline_mode = #tpu.pipeline_mode<synchronous>, transform_indices = @transform_3, window_bounds = array<i64: 128, 64>}, {pipeline_mode = #tpu.pipeline_mode<synchronous>, transform_indices = @transform_4, window_bounds = array<i64: 64, 16>}, {pipeline_mode = #tpu.pipeline_mode<synchronous>, transform_indices = @transform_5, window_bounds = array<i64: 1, 512>}, {transform_indices = @transform_6, window_bounds = array<i64: 8, 16>}]} {
    %c0 = arith.constant 0 : index
    %c0_0 = arith.constant 0 : index
    %0 = vector.load %arg6[%c0, %c0_0] : memref<1x512xf32, #tpu.memory_space<vmem>>, vector<1x128xf32>
    %c0_1 = arith.constant 0 : index
    %c128 = arith.constant 128 : index
    %1 = vector.load %arg6[%c0_1, %c128] : memref<1x512xf32, #tpu.memory_space<vmem>>, vector<1x128xf32>
    %c0_2 = arith.constant 0 : index
    %c256 = arith.constant 256 : index
    %2 = vector.load %arg6[%c0_2, %c256] : memref<1x512xf32, #tpu.memory_space<vmem>>, vector<1x64xf32>
    %c0_3 = arith.constant 0 : index
    %c384 = arith.constant 384 : index
    %3 = vector.load %arg6[%c0_3, %c384] : memref<1x512xf32, #tpu.memory_space<vmem>>, vector<1x16xf32>
    %c0_4 = arith.constant 0 : index
    %c0_5 = arith.constant 0 : index
    %4 = vector.load %arg1[%c0_4, %c0_5] : memref<8x32xf32, #tpu.memory_space<vmem>>, vector<8x32xf32>
    %5 = arith.truncf %4 : vector<8x32xf32> to vector<8x32xbf16>
    %c0_6 = arith.constant 0 : index
    %c0_7 = arith.constant 0 : index
    %6 = vector.load %arg2[%c0_6, %c0_7] : memref<32x128xbf16, #tpu.memory_space<vmem>>, vector<32x128xbf16>
    %cst = arith.constant dense<0.000000e+00> : vector<8x128xf32>
    %7 = tpu.matmul %5, %6, %cst {dimension_numbers = #tpu.dot_dimension_numbers<[1], [0], [0], [1], [0, 0, 1, 1], [], []>} : vector<8x32xbf16>, vector<32x128xbf16>, vector<8x128xf32> -> vector<8x128xf32>
    %8 = vector.broadcast %0 : vector<1x128xf32> to vector<8x128xf32>
    %9 = arith.addf %7, %8 : vector<8x128xf32>
    %cst_8 = arith.constant 0.000000e+00 : f32
    %10 = vector.broadcast %cst_8 : f32 to vector<8x128xf32>
    %11 = arith.maximumf %9, %10 : vector<8x128xf32>
    %12 = arith.truncf %11 : vector<8x128xf32> to vector<8x128xbf16>
    %c0_9 = arith.constant 0 : index
    %c0_10 = arith.constant 0 : index
    %13 = vector.load %arg3[%c0_9, %c0_10] : memref<128x128xbf16, #tpu.memory_space<vmem>>, vector<128x128xbf16>
    %cst_11 = arith.constant dense<0.000000e+00> : vector<8x128xf32>
    %14 = tpu.matmul %12, %13, %cst_11 {dimension_numbers = #tpu.dot_dimension_numbers<[1], [0], [0], [1], [0, 0, 1, 1], [], []>} : vector<8x128xbf16>, vector<128x128xbf16>, vector<8x128xf32> -> vector<8x128xf32>
    %15 = vector.broadcast %1 : vector<1x128xf32> to vector<8x128xf32>
    %16 = arith.addf %14, %15 : vector<8x128xf32>
    %cst_12 = arith.constant 0.000000e+00 : f32
    %17 = vector.broadcast %cst_12 : f32 to vector<8x128xf32>
    %18 = arith.maximumf %16, %17 : vector<8x128xf32>
    %19 = arith.truncf %18 : vector<8x128xf32> to vector<8x128xbf16>
    %c0_13 = arith.constant 0 : index
    %c0_14 = arith.constant 0 : index
    %20 = vector.load %arg4[%c0_13, %c0_14] : memref<128x64xbf16, #tpu.memory_space<vmem>>, vector<128x64xbf16>
    %cst_15 = arith.constant dense<0.000000e+00> : vector<8x64xf32>
    %21 = tpu.matmul %19, %20, %cst_15 {dimension_numbers = #tpu.dot_dimension_numbers<[1], [0], [0], [1], [0, 0, 1, 1], [], []>} : vector<8x128xbf16>, vector<128x64xbf16>, vector<8x64xf32> -> vector<8x64xf32>
    %22 = vector.broadcast %2 : vector<1x64xf32> to vector<8x64xf32>
    %23 = arith.addf %21, %22 : vector<8x64xf32>
    %cst_16 = arith.constant 0.000000e+00 : f32
    %24 = vector.broadcast %cst_16 : f32 to vector<8x64xf32>
    %25 = arith.maximumf %23, %24 : vector<8x64xf32>
    %26 = arith.truncf %25 : vector<8x64xf32> to vector<8x64xbf16>
    %c0_17 = arith.constant 0 : index
    %c0_18 = arith.constant 0 : index
    %27 = vector.load %arg5[%c0_17, %c0_18] : memref<64x16xbf16, #tpu.memory_space<vmem>>, vector<64x16xbf16>
    %cst_19 = arith.constant dense<0.000000e+00> : vector<8x16xf32>
    %28 = tpu.matmul %26, %27, %cst_19 {dimension_numbers = #tpu.dot_dimension_numbers<[1], [0], [0], [1], [0, 0, 1, 1], [], []>} : vector<8x64xbf16>, vector<64x16xbf16>, vector<8x16xf32> -> vector<8x16xf32>
    %29 = vector.broadcast %3 : vector<1x16xf32> to vector<8x16xf32>
    %30 = arith.addf %28, %29 : vector<8x16xf32>
    %c0_20 = arith.constant 0 : index
    %c0_21 = arith.constant 0 : index
    %31 = vector.load %arg7[%c0_20, %c0_21] : memref<8x16xf32, #tpu.memory_space<vmem>>, vector<8x16xf32>
    tpu.vector_store %arg7[%c0_20, %c0_21], %30 {strides = array<i32>} : memref<8x16xf32, #tpu.memory_space<vmem>>, vector<8x16xf32>,
    return
  }
  func.func @transform_0(%arg0: i32) -> (i32, i32) {
    %c0_i32 = arith.constant 0 : i32
    %c0_i32_0 = arith.constant 0 : i32
    return %arg0, %c0_i32 : i32, i32
  }
  func.func @transform_1(%arg0: i32) -> (i32, i32) {
    %c0_i32 = arith.constant 0 : i32
    %c0_i32_0 = arith.constant 0 : i32
    %c0_i32_1 = arith.constant 0 : i32
    return %c0_i32, %c0_i32_0 : i32, i32
  }
  func.func @transform_2(%arg0: i32) -> (i32, i32) {
    %c0_i32 = arith.constant 0 : i32
    %c0_i32_0 = arith.constant 0 : i32
    %c0_i32_1 = arith.constant 0 : i32
    return %c0_i32, %c0_i32_0 : i32, i32
  }
  func.func @transform_3(%arg0: i32) -> (i32, i32) {
    %c0_i32 = arith.constant 0 : i32
    %c0_i32_0 = arith.constant 0 : i32
    %c0_i32_1 = arith.constant 0 : i32
    return %c0_i32, %c0_i32_0 : i32, i32
  }
  func.func @transform_4(%arg0: i32) -> (i32, i32) {
    %c0_i32 = arith.constant 0 : i32
    %c0_i32_0 = arith.constant 0 : i32
    %c0_i32_1 = arith.constant 0 : i32
    return %c0_i32, %c0_i32_0 : i32, i32
  }
  func.func @transform_5(%arg0: i32) -> (i32, i32) {
    %c0_i32 = arith.constant 0 : i32
    %c0_i32_0 = arith.constant 0 : i32
    %c0_i32_1 = arith.constant 0 : i32
    return %c0_i32, %c0_i32_0 : i32, i32
  }
  func.func @transform_6(%arg0: i32) -> (i32, i32) {
    %c0_i32 = arith.constant 0 : i32
    %c0_i32_0 = arith.constant 0 : i32
    return %arg0, %c0_i32 : i32, i32
  }
}

</mosaic_0001>

<llo_original>
// kernel: tpu_custom_call.1
$region0: #{tpu_custom_call.1}
  #allocation0 [shape = 'u32[]', space=smem, size = 0x4, offset = 0x4, fixed_abs, tag = 'smem constant byte address 0x4 - core index']
  #allocation1 [shape = 'u32[72,128]{1,0:T(1,128)}', space=vmem, size = 0x9000, scoped, tag = 'internal scratch']
  %s0 = inlined_call_operand.vmem [shape: f32[8,32], index: 0, kind: input, shape index: {}]
  %s1 = inlined_call_operand.vmem [shape: bf16[32,128], index: 1, kind: input, shape index: {}]
  %s2 = inlined_call_operand.vmem [shape: bf16[128,128], index: 2, kind: input, shape index: {}]
  %s3 = inlined_call_operand.vmem [shape: bf16[128,64], index: 3, kind: input, shape index: {}]
  %s4 = inlined_call_operand.vmem [shape: bf16[64,16], index: 4, kind: input, shape index: {}]
  %s5 = inlined_call_operand.vmem [shape: f32[1,512], index: 5, kind: input, shape index: {}]
  %s6 = inlined_call_operand.hbm [shape: f32[8,16], index: 6, kind: output, shape index: {}]
  %s7 = sld [smem:[#allocation0]]
  $region34: #{tpu_custom_call.1} parent=0
    _
  %s9 = ssub.s32 1, %s7
  %s10 = scalar_select 0, %s9, %s7
  $region1: #{tpu_custom_call.1} parent=0
    #allocation2 [shape = 'u8[4096]{0}', space=vmem, size = 0x1000, scoped, tag = 'output window, operand 0, single buffered']
    #allocation3 [shape = 's32[1]{0}', space=sflag, size = 0x4, scoped, tag = 'scoped memory for tpu_custom_call.1']
    %11 = vsyncpa [#allocation3], 0
    // Predicated region
    $region2: #{tpu_custom_call.1} parent=1 // pred_check
      _
    $region3: #{tpu_custom_call.1} parent=1 // pred_check_branch
      %13 = sbr.rel (0) target = $region5
    $region4: #{tpu_custom_call.1} parent=1 // pred_region
      _
    $region5: #{tpu_custom_call.1} parent=1 // pred_fallthru
      _
    // Predicated region
    $region6: #{tpu_custom_call.1} parent=1 // pred_check
      _
    $region7: #{tpu_custom_call.1} parent=1 // pred_check_branch
      %15 = sbr.rel (0) target = $region9
    $region8: #{tpu_custom_call.1} parent=1 // pred_region
      _
    $region9: #{tpu_custom_call.1} parent=1 // pred_fallthru
      _
    // Predicated region
    $region10: #{tpu_custom_call.1} parent=1 // pred_check
      _
    $region11: #{tpu_custom_call.1} parent=1 // pred_check_branch
      %17 = sbr.rel (0) target = $region13
    $region12: #{tpu_custom_call.1} parent=1 // pred_region
      _
    $region13: #{tpu_custom_call.1} parent=1 // pred_fallthru
      _
    // Predicated region
    $region14: #{tpu_custom_call.1} parent=1 // pred_check
      _
    $region15: #{tpu_custom_call.1} parent=1 // pred_check_branch
      %19 = sbr.rel (0) target = $region17
    $region16: #{tpu_custom_call.1} parent=1 // pred_region
      _
    $region17: #{tpu_custom_call.1} parent=1 // pred_fallthru
      _
    // Predicated region
    $region18: #{tpu_custom_call.1} parent=1 // pred_check
      _
    $region19: #{tpu_custom_call.1} parent=1 // pred_check_branch
      %21 = sbr.rel (0) target = $region21
    $region20: #{tpu_custom_call.1} parent=1 // pred_region
      _
    $region21: #{tpu_custom_call.1} parent=1 // pred_fallthru
      _
    // Predicated region
    $region22: #{tpu_custom_call.1} parent=1 // pred_check
      _
    $region23: #{tpu_custom_call.1} parent=1 // pred_check_branch
      %23 = sbr.rel (0) target = $region25
    $region24: #{tpu_custom_call.1} parent=1 // pred_region
      _
    $region25: #{tpu_custom_call.1} parent=1 // pred_fallthru
      _
    %v25 = vld [vmem:[%s5] sm:$0x1]
    %v26 = vld [vmem:[%s5 + $0x1] sm:$0x1]
    %v27 = vld [vmem:[%s5 + $0x2] sm:$0x1]
    %v28 = vld [vmem:[%s5 + $0x3] sm:$0x1]
    %v29 = vld [vmem:[%s0] sm:$0xff]
    %v30 = vpack.c.bf16 %v29, %v29
    %v31 = vld [vmem:[%s1] sm:$0xf]
    %v32 = vld [vmem:[%s1 + $0x4] sm:$0xf]
    %v33 = vld [vmem:[%s1 + $0x8] sm:$0xf]
    %v34 = vld [vmem:[%s1 + $0xc] sm:$0xf]
    %v36 = vperm.slane %v25, 0
    %v42 = vunpack.c.l.b16 %v31
    %v43 = vunpack.c.l.b16 %v32
    %v44 = vunpack.c.l.b16 %v33
    %v45 = vunpack.c.l.b16 %v34
    %v46 = vpack.c.b16 %v43, %v42
    %v47 = vpack.c.b16 %v45, %v44
    %vm50 = vcmask 261120
    %v52 = vsel %vm50, %v30, 0
    %54 = vmatpush.bf16.msra.mxu0 0
    %55 = vmatpush.bf16.msra.mxu0 0
    %56 = vmatpush.bf16.msra.mxu0 0
    %57 = vmatpush.bf16.msra.mxu0 0
    %58 = vmatpush.bf16.msra.mxu0 0
    %59 = vmatpush.bf16.msra.mxu0 0
    %60 = vmatpush.bf16.msra.mxu0 %v47
    %61 = vmatpush.bf16.msra.mxu0 %v46
    %62 = vmatmul.bf16.gmra.mxu0 %v52
    %v63 = vpop.f32.mrf.mxu0
    %v64 = vadd.f32 %v36, %v63
    %v65 = vpop.f32.mrf.mxu0
    %66 = vdwg.mxu0
    %v67 = vmax.f32 %v64, 0.0
    %v68 = vpack.c.bf16 %v67, %v67
    %v69 = vld [vmem:[%s2] sm:$0xf]
    %v70 = vld [vmem:[%s2 + $0x4] sm:$0xf]
    %v71 = vld [vmem:[%s2 + $0x8] sm:$0xf]
    %v72 = vld [vmem:[%s2 + $0xc] sm:$0xf]
    %v73 = vld [vmem:[%s2 + $0x10] sm:$0xf]
    %v74 = vld [vmem:[%s2 + $0x14] sm:$0xf]
    %v75 = vld [vmem:[%s2 + $0x18] sm:$0xf]
    %v76 = vld [vmem:[%s2 + $0x1c] sm:$0xf]
    %v77 = vld [vmem:[%s2 + $0x20] sm:$0xf]
    %v78 = vld [vmem:[%s2 + $0x24] sm:$0xf]
    %v79 = vld [vmem:[%s2 + $0x28] sm:$0xf]
    %v80 = vld [vmem:[%s2 + $0x2c] sm:$0xf]
    %v81 = vld [vmem:[%s2 + $0x30] sm:$0xf]
    %v82 = vld [vmem:[%s2 + $0x34] sm:$0xf]
    %v83 = vld [vmem:[%s2 + $0x38] sm:$0xf]
    %v84 = vld [vmem:[%s2 + $0x3c] sm:$0xf]
    %v86 = vperm.slane %v26, 0
    %v104 = vunpack.c.l.b16 %v69
    %v105 = vunpack.c.l.b16 %v70
    %v106 = vunpack.c.l.b16 %v71
    %v107 = vunpack.c.l.b16 %v72
    %v108 = vunpack.c.l.b16 %v73
    %v109 = vunpack.c.l.b16 %v74
    %v110 = vunpack.c.l.b16 %v75
    %v111 = vunpack.c.l.b16 %v76
    %v112 = vunpack.c.l.b16 %v77
    %v113 = vunpack.c.l.b16 %v78
    %v114 = vunpack.c.l.b16 %v79
    %v115 = vunpack.c.l.b16 %v80
    %v116 = vunpack.c.l.b16 %v81
    %v117 = vunpack.c.l.b16 %v82
    %v118 = vunpack.c.l.b16 %v83
    %v119 = vunpack.c.l.b16 %v84
    %v120 = vpack.c.b16 %v105, %v104
    %v121 = vpack.c.b16 %v107, %v106
    %v122 = vpack.c.b16 %v109, %v108
    %v123 = vpack.c.b16 %v111, %v110
    %v124 = vpack.c.b16 %v113, %v112
    %v125 = vpack.c.b16 %v115, %v114
    %v126 = vpack.c.b16 %v117, %v116
    %v127 = vpack.c.b16 %v119, %v118
    %136 = vmatpush.bf16.msra.mxu0 %v127
    %137 = vmatpush.bf16.msra.mxu0 %v126
    %138 = vmatpush.bf16.msra.mxu0 %v125
    %139 = vmatpush.bf16.msra.mxu0 %v124
    %140 = vmatpush.bf16.msra.mxu0 %v123
    %141 = vmatpush.bf16.msra.mxu0 %v122
    %142 = vmatpush.bf16.msra.mxu0 %v121
    %143 = vmatpush.bf16.msra.mxu0 %v120
    %144 = vmatmul.bf16.gmra.mxu0 %v68
    %v145 = vpop.f32.mrf.mxu0
    %v146 = vadd.f32 %v86, %v145
    %v147 = vpop.f32.mrf.mxu0
    %148 = vdwg.mxu0
    %v149 = vmax.f32 %v146, 0.0
    %v150 = vpack.c.bf16 %v149, %v149
    %v151 = vld [vmem:[%s3] sm:$0xf]
    %v152 = vld [vmem:[%s3 + $0x4] sm:$0xf]
    %v153 = vld [vmem:[%s3 + $0x8] sm:$0xf]
    %v154 = vld [vmem:[%s3 + $0xc] sm:$0xf]
    %v155 = vld [vmem:[%s3 + $0x10] sm:$0xf]
    %v156 = vld [vmem:[%s3 + $0x14] sm:$0xf]
    %v157 = vld [vmem:[%s3 + $0x18] sm:$0xf]
    %v158 = vld [vmem:[%s3 + $0x1c] sm:$0xf]
    %v159 = vld [vmem:[%s3 + $0x20] sm:$0xf]
    %v160 = vld [vmem:[%s3 + $0x24] sm:$0xf]
    %v161 = vld [vmem:[%s3 + $0x28] sm:$0xf]
    %v162 = vld [vmem:[%s3 + $0x2c] sm:$0xf]
    %v163 = vld [vmem:[%s3 + $0x30] sm:$0xf]
    %v164 = vld [vmem:[%s3 + $0x34] sm:$0xf]
    %v165 = vld [vmem:[%s3 + $0x38] sm:$0xf]
    %v166 = vld [vmem:[%s3 + $0x3c] sm:$0xf]
    %v168 = vperm.slane %v27, 0
    %v186 = vunpack.c.l.b16 %v151
    %v187 = vunpack.c.l.b16 %v152
    %v188 = vunpack.c.l.b16 %v153
    %v189 = vunpack.c.l.b16 %v154
    %v190 = vunpack.c.l.b16 %v155
    %v191 = vunpack.c.l.b16 %v156
    %v192 = vunpack.c.l.b16 %v157
    %v193 = vunpack.c.l.b16 %v158
    %v194 = vunpack.c.l.b16 %v159
    %v195 = vunpack.c.l.b16 %v160
    %v196 = vunpack.c.l.b16 %v161
    %v197 = vunpack.c.l.b16 %v162
    %v198 = vunpack.c.l.b16 %v163
    %v199 = vunpack.c.l.b16 %v164
    %v200 = vunpack.c.l.b16 %v165
    %v201 = vunpack.c.l.b16 %v166
    %v202 = vpack.c.b16 %v187, %v186
    %v203 = vpack.c.b16 %v189, %v188
    %v204 = vpack.c.b16 %v191, %v190
    %v205 = vpack.c.b16 %v193, %v192
    %v206 = vpack.c.b16 %v195, %v194
    %v207 = vpack.c.b16 %v197, %v196
    %v208 = vpack.c.b16 %v199, %v198
    %v209 = vpack.c.b16 %v201, %v200
    %218 = vmatpush.bf16.msra.mxu0 %v209
    %219 = vmatpush.bf16.msra.mxu0 %v208
    %220 = vmatpush.bf16.msra.mxu0 %v207
    %221 = vmatpush.bf16.msra.mxu0 %v206
    %222 = vmatpush.bf16.msra.mxu0 %v205
    %223 = vmatpush.bf16.msra.mxu0 %v204
    %224 = vmatpush.bf16.msra.mxu0 %v203
    %225 = vmatpush.bf16.msra.mxu0 %v202
    %226 = vmatmul.bf16.gmra.mxu0 %v150
    %v227 = vpop.f32.mrf.mxu0
    %v228 = vadd.f32 %v168, %v227
    %v229 = vpop.f32.mrf.mxu0
    %230 = vdwg.mxu0
    %v231 = vmax.f32 %v228, 0.0
    %v232 = vpack.c.bf16 %v231, %v231
    %v233 = vld [vmem:[%s4] sm:$0xf]
    %v234 = vld [vmem:[%s4 + $0x4] sm:$0xf]
    %v235 = vld [vmem:[%s4 + $0x8] sm:$0xf]
    %v236 = vld [vmem:[%s4 + $0xc] sm:$0xf]
    %v237 = vld [vmem:[%s4 + $0x10] sm:$0xf]
    %v238 = vld [vmem:[%s4 + $0x14] sm:$0xf]
    %v239 = vld [vmem:[%s4 + $0x18] sm:$0xf]
    %v240 = vld [vmem:[%s4 + $0x1c] sm:$0xf]
    %v242 = vperm.slane %v28, 0
    %v252 = vunpack.c.l.b16 %v233
    %v253 = vunpack.c.l.b16 %v234
    %v254 = vunpack.c.l.b16 %v235
    %v255 = vunpack.c.l.b16 %v236
    %v256 = vunpack.c.l.b16 %v237
    %v257 = vunpack.c.l.b16 %v238
    %v258 = vunpack.c.l.b16 %v239
    %v259 = vunpack.c.l.b16 %v240
    %v260 = vpack.c.b16 %v253, %v252
    %v261 = vpack.c.b16 %v255, %v254
    %v262 = vpack.c.b16 %v257, %v256
    %v263 = vpack.c.b16 %v259, %v258
    %vm268 = vcmask 523264
    %v270 = vsel %vm268, %v232, 0
    %272 = vmatpush.bf16.msra.mxu0 0
    %273 = vmatpush.bf16.msra.mxu0 0
    %274 = vmatpush.bf16.msra.mxu0 0
    %275 = vmatpush.bf16.msra.mxu0 0
    %276 = vmatpush.bf16.msra.mxu0 %v263
    %277 = vmatpush.bf16.msra.mxu0 %v262
    %278 = vmatpush.bf16.msra.mxu0 %v261
    %279 = vmatpush.bf16.msra.mxu0 %v260
    %280 = vmatmul.bf16.gmra.mxu0 %v270
    %v281 = vpop.f32.mrf.mxu0
    %v282 = vadd.f32 %v242, %v281
    %v283 = vpop.f32.mrf.mxu0
    %284 = vdwg.mxu0
    %vm285 = vcmask 130048
    %286 = vst.msk [vmem:[#allocation2] sm:$0xff] %vm285, %v282
    // Predicated region
    $region26: #{tpu_custom_call.1} parent=1 // pred_check
      _
    $region27: #{tpu_custom_call.1} parent=1 // pred_check_branch
      %288 = sbr.rel (0) target = $region29
    $region28: #{tpu_custom_call.1} parent=1 // pred_region
      %290 = vsyncadd [#allocation3], 0
      %s292 = sshll.u32 [#allocation2], 4
      %s293 = int_to_ptr.vmem [resolvable:$true] %s292
      %s294 = sshll.u32 %s6, 4
      %s295 = int_to_ptr.hbm [resolvable:$true] %s294
      %297 = dma.vmem_to_hbm [thread:$0]  %s293, 128, %s295, [#allocation3]
    $region29: #{tpu_custom_call.1} parent=1 // pred_fallthru
      _
    // Predicated region
    $region30: #{tpu_custom_call.1} parent=1 // pred_check
      _
    $region31: #{tpu_custom_call.1} parent=1 // pred_check_branch
      %299 = sbr.rel (0) target = $region33
    $region32: #{tpu_custom_call.1} parent=1 // pred_region
      %301 = dma.done [#allocation3], 128
    $region33: #{tpu_custom_call.1} parent=1 // pred_fallthru
      _
    %302 = vsyncpa [#allocation3], 1

</llo_original>
